<compile_context>
chip_gen: v7x
topology: tpu7x:2x2x1
jax: 0.10.0
libtpu: 0.0.40
codegen_flags: <defaults>
</compile_context>

<pallas_src>
import functools

import jax
import jax.numpy as jnp
from jax.experimental import pallas as pl
from jax.experimental.pallas import tpu as pltpu

_LANE = 128


def _round_up(a, b):
    return ((a + b - 1) // b) * b


def _shared_mlp(mean_c, max_c, w1_ref, w2_ref):
    """Shared 1x1-conv MLP + sigmoid on the two pooled columns -> (C,1) f32 gate."""
    w1 = w1_ref[...].astype(jnp.float32)                       # (Cr, C)
    w2 = w2_ref[...].astype(jnp.float32)                       # (C, Cr)
    # Build the (C, 2) [mean | max] matrix via a lane broadcast + select so the
    # fc1 weights are pushed through the MXU once for both pooled vectors.
    col = jax.lax.broadcasted_iota(jnp.int32, (mean_c.shape[0], 2), 1)
    pooled = jnp.where(col == 0, mean_c, max_c)                 # (C, 2)
    h = jnp.maximum(
        jnp.dot(w1, pooled, preferred_element_type=jnp.float32), 0.0)  # (Cr, 2)
    h = jnp.sum(h, axis=1, keepdims=True)                       # (Cr, 1)  fc2 is linear
    s = jnp.dot(w2, h, preferred_element_type=jnp.float32)      # (C, 1)
    return 1.0 / (1.0 + jnp.exp(-s))                            # sigmoid (EUP)


# ---------------------------------------------------------------------------
# Fused single-pass kernel: pool + MLP + sigmoid + gate, one batch per step
# ---------------------------------------------------------------------------
def _fused_kernel(x_ref, w1_ref, w2_ref, o_ref, *, hw_true):
    x = x_ref[0]                                                # (C, HWp) native dtype
    C, HWp = x.shape
    # f32-accumulated pooled stats; no full-block f32 copy (pad lanes are 0).
    sum_c = jnp.sum(x, axis=1, keepdims=True, dtype=jnp.float32)
    mean_c = sum_c * (1.0 / hw_true)
    if HWp != hw_true:
        lane = jax.lax.broadcasted_iota(jnp.int32, (C, HWp), 1)
        xm = jnp.where(lane < hw_true, x, jnp.array(-jnp.inf, x.dtype))
    else:
        xm = x
    max_c = jnp.max(xm, axis=1, keepdims=True).astype(jnp.float32)

    att = _shared_mlp(mean_c, max_c, w1_ref, w2_ref)            # (C, 1) f32
    # Gate in the native dtype (att broadcasts across HW lanes).
    o_ref[0] = (x * att.astype(x.dtype)).astype(o_ref.dtype)


# ---------------------------------------------------------------------------
# Tiled path, pass 1: streaming sum / running max over HW tiles, MLP on last
# ---------------------------------------------------------------------------
def _pool_att_kernel(x_ref, w1_ref, w2_ref, att_ref, sum_sc, max_sc,
                     *, hw_true, thw, masked):
    t = pl.program_id(1)
    x = x_ref[0]                                                # (C, THW)

    @pl.when(t == 0)
    def _():
        sum_sc[...] = jnp.zeros_like(sum_sc)
        max_sc[...] = jnp.full_like(max_sc, -jnp.inf)

    sum_sc[...] += jnp.sum(x, axis=1, keepdims=True, dtype=jnp.float32)
    if masked:
        lane = jax.lax.broadcasted_iota(jnp.int32, x.shape, 1) + t * thw
        xm = jnp.where(lane < hw_true, x, jnp.array(-jnp.inf, x.dtype))
    else:
        xm = x
    max_sc[...] = jnp.maximum(
        max_sc[...], jnp.max(xm, axis=1, keepdims=True).astype(jnp.float32))

    @pl.when(t == pl.num_programs(1) - 1)
    def _():
        mean_c = sum_sc[...] * (1.0 / hw_true)
        att_ref[0] = _shared_mlp(mean_c, max_sc[...], w1_ref, w2_ref)


# ---------------------------------------------------------------------------
# Tiled path, pass 2: fully parallel gating sweep
# ---------------------------------------------------------------------------
def _gate_kernel(att_ref, x_ref, o_ref):
    att = att_ref[0]                                            # (C, 1) f32
    x = x_ref[0]                                                # (C, THW)
    o_ref[0] = (x * att.astype(x.dtype)).astype(o_ref.dtype)


# ---------------------------------------------------------------------------
# Wrapper
# ---------------------------------------------------------------------------
def channel_attention(x, w1, w2, *, force_tiled=False, tile_hw=None):
    """x: (B, C, H, W); w1: (C//r, C); w2: (C, C//r)."""
    B, C, H, W = x.shape
    Cr = w1.shape[0]
    assert w1.shape == (Cr, C) and w2.shape == (C, Cr) and Cr >= 1
    HW = H * W
    dt = jnp.dtype(x.dtype).itemsize

    HWp_full = max(_LANE, _round_up(HW, _LANE))                 # lane-dense last dim
    block_bytes = C * HWp_full * dt
    w_bytes = (w1.size * jnp.dtype(w1.dtype).itemsize
               + w2.size * jnp.dtype(w2.dtype).itemsize)

    # Fused path needs in + out blocks, each double-buffered. Budget is set
    # conservatively for v7x's 64 MiB VMEM per TensorCore.
    FUSED_BUDGET = 48 << 20
    use_tiled = force_tiled or (4 * block_bytes + 2 * w_bytes > FUSED_BUDGET)

    x2 = x.reshape(B, C, HW)                                    # free, contiguous reshape

    if not use_tiled:
        HWp = HWp_full
        if HWp != HW:
            x2 = jnp.pad(x2, ((0, 0), (0, 0), (0, HWp - HW)))   # zero-pad lanes
        vmem_limit = int(min(max(4 * block_bytes + 4 * w_bytes + (2 << 20),
                                 16 << 20), 64 << 20))
        out = pl.pallas_call(
            functools.partial(_fused_kernel, hw_true=HW),
            out_shape=jax.ShapeDtypeStruct((B, C, HWp), x.dtype),
            grid_spec=pltpu.PrefetchScalarGridSpec(
                num_scalar_prefetch=0,
                grid=(B,),
                in_specs=[
                    pl.BlockSpec((1, C, HWp), lambda b: (b, 0, 0)),
                    pl.BlockSpec((Cr, C), lambda b: (0, 0)),
                    pl.BlockSpec((C, Cr), lambda b: (0, 0)),
                ],
                out_specs=pl.BlockSpec((1, C, HWp), lambda b: (b, 0, 0)),
            ),
            compiler_params=pltpu.CompilerParams(
                dimension_semantics=("parallel",),
                vmem_limit_bytes=vmem_limit),
        )(x2, w1, w2)
        if HWp != HW:
            out = out[:, :, :HW]
        return out.reshape(B, C, H, W)

    # ----- tiled two-pass fallback (large C*HW, or forced for v7x megacore) -----
    TILE_BUDGET = 24 << 20                                      # per in/out tile pair
    thw = tile_hw if tile_hw is not None else (TILE_BUDGET // (4 * C * dt))
    thw = max(_LANE, (thw // _LANE) * _LANE)
    THW = min(thw, HWp_full)
    HWp = _round_up(HW, THW)
    num_t = HWp // THW
    if HWp != HW:
        x2 = jnp.pad(x2, ((0, 0), (0, 0), (0, HWp - HW)))
    tile_bytes = C * THW * dt
    vmem_limit = int(min(max(8 * tile_bytes + 4 * w_bytes + (2 << 20),
                             16 << 20), 64 << 20))
    masked = (HWp != HW)

    att = pl.pallas_call(
        functools.partial(_pool_att_kernel, hw_true=HW, thw=THW, masked=masked),
        out_shape=jax.ShapeDtypeStruct((B, C, 1), jnp.float32),
        grid_spec=pltpu.PrefetchScalarGridSpec(
            num_scalar_prefetch=0,
            grid=(B, num_t),
            in_specs=[
                pl.BlockSpec((1, C, THW), lambda b, t: (b, 0, t)),
                pl.BlockSpec((Cr, C), lambda b, t: (0, 0)),
                pl.BlockSpec((C, Cr), lambda b, t: (0, 0)),
            ],
            out_specs=pl.BlockSpec((1, C, 1), lambda b, t: (b, 0, 0)),
            scratch_shapes=[pltpu.VMEM((C, 1), jnp.float32),
                            pltpu.VMEM((C, 1), jnp.float32)],
        ),
        compiler_params=pltpu.CompilerParams(
            dimension_semantics=("parallel", "arbitrary"),
            vmem_limit_bytes=vmem_limit),
    )(x2, w1, w2)

    out = pl.pallas_call(
        _gate_kernel,
        out_shape=jax.ShapeDtypeStruct((B, C, HWp), x.dtype),
        grid_spec=pltpu.PrefetchScalarGridSpec(
            num_scalar_prefetch=0,
            grid=(B, num_t),
            in_specs=[
                pl.BlockSpec((1, C, 1), lambda b, t: (b, 0, 0)),
                pl.BlockSpec((1, C, THW), lambda b, t: (b, 0, t)),
            ],
            out_specs=pl.BlockSpec((1, C, THW), lambda b, t: (b, 0, t)),
        ),
        compiler_params=pltpu.CompilerParams(
            dimension_semantics=("parallel", "parallel"),
            vmem_limit_bytes=vmem_limit),
    )(att, x2)
    if HWp != HW:
        out = out[:, :, :HW]
    return out.reshape(B, C, H, W)


# ---------------------------------------------------------------------------
# Deterministic parameter init (PyTorch-like kaiming-uniform, no bias)
# ---------------------------------------------------------------------------
def init_params(key, channel, reduction=16):
    cr = channel // reduction
    assert cr >= 1, "channel must be >= reduction"
    k1, k2 = jax.random.split(key)
    b1 = 1.0 / (channel ** 0.5)
    w1 = jax.random.uniform(k1, (cr, channel), jnp.float32, -b1, b1)
    b2 = 1.0 / (cr ** 0.5)
    w2 = jax.random.uniform(k2, (channel, cr), jnp.float32, -b2, b2)
    return w1, w2


# ---------------------------------------------------------------------------
# Pure-JAX reference (for correctness check)
# ---------------------------------------------------------------------------
def channel_attention_ref(x, w1, w2):
    avg = jnp.mean(x, axis=(2, 3))                              # (B, C)
    mx = jnp.max(x, axis=(2, 3))                                # (B, C)

    def fc(v):
        h = jnp.maximum(v @ w1.T, 0.0)                          # (B, Cr)
        return h @ w2.T                                         # (B, C)

    att = jax.nn.sigmoid(fc(avg) + fc(mx))                      # (B, C)
    return x * att[:, :, None, None]


if __name__ == "__main__":
    key = jax.random.PRNGKey(0)
    kx, kp = jax.random.split(key)

    B, C, H, W = 2, 64, 16, 16
    reduction = 16
    x = jax.random.normal(kx, (B, C, H, W), jnp.float32)
    w1, w2 = init_params(kp, C, reduction)
    ref = channel_attention_ref(x, w1, w2)

    # Fused single-pass path.
    out = jax.block_until_ready(channel_attention(x, w1, w2))
    assert out.shape == x.shape and out.dtype == x.dtype
    assert jnp.allclose(out, ref, atol=1e-4, rtol=1e-4)

    # Tiled two-pass fallback (what large C*H*W takes), forced at small shape.
    out_t = jax.block_until_ready(
        channel_attention(x, w1, w2, force_tiled=True, tile_hw=128))
    assert jnp.allclose(out_t, ref, atol=1e-4, rtol=1e-4)

    # Non-multiple-of-128 spatial size exercises the lane-padding / mask path.
    x2 = jax.random.normal(kx, (2, 64, 7, 7), jnp.float32)
    out2 = jax.block_until_ready(channel_attention(x2, w1, w2))
    assert jnp.allclose(out2, channel_attention_ref(x2, w1, w2), atol=1e-4, rtol=1e-4)

    print("KERNEL_OK")
</pallas_src>

<mosaic_0001>
module attributes {stable_mosaic.version = 11 : i64} {
  func.func @_fused_kernel(%arg0: i32, %arg1: memref<1x64x256xf32, #tpu.memory_space<vmem>>, %arg2: memref<4x64xf32, #tpu.memory_space<vmem>>, %arg3: memref<64x4xf32, #tpu.memory_space<vmem>>, %arg4: memref<1x64x256xf32, #tpu.memory_space<vmem>>) attributes {dimension_semantics = [#tpu.dimension_semantics<parallel>], iteration_bounds = array<i64: 2>, scalar_prefetch = 0 : i64, scratch_operands = 0 : i64, tpu.core_type = #tpu.core_type<tc>, window_params = [{transform_indices = @transform_0, window_bounds = array<i64: 1, 64, 256>}, {pipeline_mode = #tpu.pipeline_mode<synchronous>, transform_indices = @transform_1, window_bounds = array<i64: 4, 64>}, {pipeline_mode = #tpu.pipeline_mode<synchronous>, transform_indices = @transform_2, window_bounds = array<i64: 64, 4>}, {transform_indices = @transform_3, window_bounds = array<i64: 1, 64, 256>}]} {
    %c0 = arith.constant 0 : index
    %c0_0 = arith.constant 0 : index
    %c0_1 = arith.constant 0 : index
    %0 = vector.load %arg1[%c0, %c0_0, %c0_1] : memref<1x64x256xf32, #tpu.memory_space<vmem>>, vector<1x64x256xf32>
    %1 = vector.shape_cast %0 : vector<1x64x256xf32> to vector<64x256xf32>
    %cst = arith.constant dense<0.000000e+00> : vector<64xf32>
    %2 = vector.multi_reduction <add>, %1, %cst [1] : vector<64x256xf32> to vector<64xf32>
    %3 = vector.shape_cast %2 : vector<64xf32> to vector<64x1xf32>
    %cst_2 = arith.constant 3.906250e-03 : f32
    %4 = vector.broadcast %cst_2 : f32 to vector<64x1xf32>
    %5 = arith.mulf %3, %4 : vector<64x1xf32>
    %cst_3 = arith.constant dense<0xFF800000> : vector<64xf32>
    %6 = vector.multi_reduction <maximumf>, %1, %cst_3 [1] : vector<64x256xf32> to vector<64xf32>
    %7 = vector.shape_cast %6 : vector<64xf32> to vector<64x1xf32>
    %c0_4 = arith.constant 0 : index
    %c0_5 = arith.constant 0 : index
    %8 = vector.load %arg2[%c0_4, %c0_5] : memref<4x64xf32, #tpu.memory_space<vmem>>, vector<4x64xf32>
    %c0_6 = arith.constant 0 : index
    %c0_7 = arith.constant 0 : index
    %9 = vector.load %arg3[%c0_6, %c0_7] : memref<64x4xf32, #tpu.memory_space<vmem>>, vector<64x4xf32>
    %10 = tpu.iota {dimensions = array<i32: 1>} : vector<64x2xi32>
    %c0_i32 = arith.constant 0 : i32
    %11 = vector.broadcast %c0_i32 : i32 to vector<64x2xi32>
    %12 = arith.cmpi eq, %10, %11 : vector<64x2xi32>
    %13 = vector.shape_cast %5 : vector<64x1xf32> to vector<64x1xf32>
    %14 = vector.broadcast %13 : vector<64x1xf32> to vector<64x2xf32>
    %15 = vector.shape_cast %7 : vector<64x1xf32> to vector<64x1xf32>
    %16 = vector.broadcast %15 : vector<64x1xf32> to vector<64x2xf32>
    %17 = arith.select %12, %14, %16 : vector<64x2xi1>, vector<64x2xf32>
    %cst_8 = arith.constant dense<0.000000e+00> : vector<4x2xf32>
    %18 = tpu.matmul %8, %17, %cst_8 {dimension_numbers = #tpu.dot_dimension_numbers<[1], [0], [0], [1], [0, 0, 1, 1], [], []>} : vector<4x64xf32>, vector<64x2xf32>, vector<4x2xf32> -> vector<4x2xf32>
    %cst_9 = arith.constant 0.000000e+00 : f32
    %19 = vector.broadcast %cst_9 : f32 to vector<4x2xf32>
    %20 = arith.maximumf %18, %19 : vector<4x2xf32>
    %cst_10 = arith.constant dense<0.000000e+00> : vector<4xf32>
    %21 = vector.multi_reduction <add>, %20, %cst_10 [1] : vector<4x2xf32> to vector<4xf32>
    %22 = vector.shape_cast %21 : vector<4xf32> to vector<4x1xf32>
    %cst_11 = arith.constant dense<0.000000e+00> : vector<64x1xf32>
    %23 = tpu.matmul %9, %22, %cst_11 {dimension_numbers = #tpu.dot_dimension_numbers<[1], [0], [0], [1], [0, 0, 1, 1], [], []>} : vector<64x4xf32>, vector<4x1xf32>, vector<64x1xf32> -> vector<64x1xf32>
    %cst_12 = arith.constant 0.000000e+00 : f32
    %24 = vector.broadcast %cst_12 : f32 to vector<64x1xf32>
    %25 = arith.subf %24, %23 : vector<64x1xf32>
    %26 = math.exp %25 : vector<64x1xf32>
    %cst_13 = arith.constant 1.000000e+00 : f32
    %27 = vector.broadcast %cst_13 : f32 to vector<64x1xf32>
    %28 = arith.addf %27, %26 : vector<64x1xf32>
    %cst_14 = arith.constant 1.000000e+00 : f32
    %29 = vector.broadcast %cst_14 : f32 to vector<64x1xf32>
    %30 = arith.divf %29, %28 : vector<64x1xf32>
    %31 = vector.broadcast %30 : vector<64x1xf32> to vector<64x256xf32>
    %32 = arith.mulf %1, %31 : vector<64x256xf32>
    %c0_15 = arith.constant 0 : index
    %c0_16 = arith.constant 0 : index
    %c0_17 = arith.constant 0 : index
    %33 = vector.load %arg4[%c0_15, %c0_16, %c0_17] : memref<1x64x256xf32, #tpu.memory_space<vmem>>, vector<1x64x256xf32>
    %34 = vector.shape_cast %33 : vector<1x64x256xf32> to vector<64x256xf32>
    %35 = vector.shape_cast %32 : vector<64x256xf32> to vector<1x64x256xf32>
    tpu.vector_store %arg4[%c0_15, %c0_16, %c0_17], %35 {strides = array<i32>} : memref<1x64x256xf32, #tpu.memory_space<vmem>>, vector<1x64x256xf32>,
    return
  }
  func.func @transform_0(%arg0: i32) -> (i32, i32, i32) {
    %c0_i32 = arith.constant 0 : i32
    %c0_i32_0 = arith.constant 0 : i32
    %c0_i32_1 = arith.constant 0 : i32
    return %arg0, %c0_i32, %c0_i32_0 : i32, i32, i32
  }
  func.func @transform_1(%arg0: i32) -> (i32, i32) {
    %c0_i32 = arith.constant 0 : i32
    %c0_i32_0 = arith.constant 0 : i32
    %c0_i32_1 = arith.constant 0 : i32
    return %c0_i32, %c0_i32_0 : i32, i32
  }
  func.func @transform_2(%arg0: i32) -> (i32, i32) {
    %c0_i32 = arith.constant 0 : i32
    %c0_i32_0 = arith.constant 0 : i32
    %c0_i32_1 = arith.constant 0 : i32
    return %c0_i32, %c0_i32_0 : i32, i32
  }
  func.func @transform_3(%arg0: i32) -> (i32, i32, i32) {
    %c0_i32 = arith.constant 0 : i32
    %c0_i32_0 = arith.constant 0 : i32
    %c0_i32_1 = arith.constant 0 : i32
    return %arg0, %c0_i32, %c0_i32_0 : i32, i32, i32
  }
}

</mosaic_0001>

<llo_original>
// kernel: tpu_custom_call.1
$region0: #{tpu_custom_call.1}
  #allocation0 [shape = 'u32[]', space=smem, size = 0x4, offset = 0x4, fixed_abs, tag = 'smem constant byte address 0x4 - core index']
  #allocation1 [shape = 'u32[144,128]{1,0:T(1,128)}', space=vmem, size = 0x12000, scoped, tag = 'internal scratch']
  %s0 = inlined_call_operand.hbm [shape: f32[2,64,256], index: 0, kind: input, shape index: {}]
  %s1 = inlined_call_operand.vmem [shape: f32[4,64], index: 1, kind: input, shape index: {}]
  %s2 = inlined_call_operand.vmem [shape: f32[64,4], index: 2, kind: input, shape index: {}]
  %s3 = inlined_call_operand.hbm [shape: f32[2,64,256], index: 3, kind: output, shape index: {}]
  %s4 = sld [smem:[#allocation0]]
  $region49: #{tpu_custom_call.1} parent=0
    _
  %s6 = ssub.s32 1, %s4
  %s7 = scalar_select 0, %s6, %s4
  $region1: #{tpu_custom_call.1} parent=0
    #allocation2 [shape = 'u8[131072]{0}', space=vmem, size = 0x20000, scoped, tag = 'input window, operand 0']
    #allocation3 [shape = 's32[2]{0}', space=sflag, size = 0x8, scoped, tag = 'scoped memory for tpu_custom_call.1']
    #allocation4 [shape = 's32[2]{0}', space=sflag, size = 0x8, scoped, tag = 'scoped memory for tpu_custom_call.1']
    #allocation5 [shape = 'u8[131072]{0}', space=vmem, size = 0x20000, scoped, tag = 'output window, operand 0']
    %8 = vsyncpa [#allocation3], 0
    %s9 = scalar_lea.sflag [#allocation3], 1
    %10 = vsyncpa %s9, 0
    %11 = vsyncpa [#allocation4], 0
    %s12 = scalar_lea.sflag [#allocation4], 1
    %13 = vsyncpa %s12, 0
    loop: start=0, step=1, limit=4
    $region2: #{tpu_custom_call.1} parent=1 // loop_pre_header
      _
    $region3: #{tpu_custom_call.1} parent=1 // loop_header
      %s15 = sphi 0, %s19
      %p16 = scmp.ge.s32.totalorder %s15, 4
      %s25 = sphi 0, %s27
      %s28 = sphi 0, %s25
      %s29 = sphi 0, %s28
      %s45 = sphi 0, %s29
      %s49 = sphi 0, %s49
      %s51 = sphi 0, %s49
      %s52 = sphi 0, %s51
      %s66 = sphi 0, %s52
      %s70 = sphi 0, %s70
      %s72 = sphi 0, %s70
      %s73 = sphi 0, %s72
      %s87 = sphi 0, %s73
      %s93 = sphi 0, %s95
      %s96 = sphi 0, %s93
      %s97 = sphi 0, %s96
      %s113 = sphi 0, %s97
    $region4: #{tpu_custom_call.1} parent=1 // loop_header_branch
      %18 = sbr.rel (%p16) target = $region8
    $region5: #{tpu_custom_call.1} parent=1 // loop_body
      %s20 = ssub.s32 %s15, 1
      %s21 = ssub.s32 %s15, 2
      %s22 = sadd.s32 %s15, 1
      %s23 = ssub.s32 %s15, %s22
      %p24 = scmp.eq.s32.totalorder %s23, 0
      %s26 = sadd.s32 %s25, 1
      %s27 = scalar_select %p24, %s25, %s26
      %p30 = pneg %p24
      %p31 = scmp.eq.s32.totalorder %s15, 1
      %p32 = por %p30, %p31
      %p33 = scmp.ne.s32.totalorder %s25, %s28
      %p34 = scmp.eq.s32.totalorder %s15, 0
      %p35 = por %p33, %p34
      %p36 = scmp.ne.s32.totalorder %s25, %s28
      %p37 = scmp.eq.s32.totalorder %s20, 1
      %p38 = por %p36, %p37
      %p39 = scmp.ne.s32.totalorder %s28, %s29
      %p40 = scmp.eq.s32.totalorder %s20, 0
      %p41 = por %p39, %p40
      %p42 = scmp.ne.s32.totalorder %s28, %s29
      %p43 = scmp.eq.s32.totalorder %s21, 1
      %p44 = por %p42, %p43
      %p46 = scmp.ne.s32.totalorder %s29, %s45
      %p47 = scmp.eq.s32.totalorder %s21, 0
      %p48 = por %p46, %p47
      %s50 = sadd.s32 %s49, 1
      %p53 = scmp.eq.s32.totalorder %s15, 1
      %p54 = scmp.ne.s32.totalorder %s49, %s51
      %p55 = scmp.eq.s32.totalorder %s15, 0
      %p56 = por %p54, %p55
      %p57 = scmp.ne.s32.totalorder %s49, %s51
      %p58 = scmp.eq.s32.totalorder %s20, 1
      %p59 = por %p57, %p58
      %p60 = scmp.ne.s32.totalorder %s51, %s52
      %p61 = scmp.eq.s32.totalorder %s20, 0
      %p62 = por %p60, %p61
      %p63 = scmp.ne.s32.totalorder %s51, %s52
      %p64 = scmp.eq.s32.totalorder %s21, 1
      %p65 = por %p63, %p64
      %p67 = scmp.ne.s32.totalorder %s52, %s66
      %p68 = scmp.eq.s32.totalorder %s21, 0
      %p69 = por %p67, %p68
      %s71 = sadd.s32 %s70, 1
      %p74 = scmp.eq.s32.totalorder %s15, 1
      %p75 = scmp.ne.s32.totalorder %s70, %s72
      %p76 = scmp.eq.s32.totalorder %s15, 0
      %p77 = por %p75, %p76
      %p78 = scmp.ne.s32.totalorder %s70, %s72
      %p79 = scmp.eq.s32.totalorder %s20, 1
      %p80 = por %p78, %p79
      %p81 = scmp.ne.s32.totalorder %s72, %s73
      %p82 = scmp.eq.s32.totalorder %s20, 0
      %p83 = por %p81, %p82
      %p84 = scmp.ne.s32.totalorder %s72, %s73
      %p85 = scmp.eq.s32.totalorder %s21, 1
      %p86 = por %p84, %p85
      %p88 = scmp.ne.s32.totalorder %s73, %s87
      %p89 = scmp.eq.s32.totalorder %s21, 0
      %p90 = por %p88, %p89
      %s91 = ssub.s32 %s15, %s22
      %p92 = scmp.eq.s32.totalorder %s91, 0
      %s94 = sadd.s32 %s93, 1
      %s95 = scalar_select %p92, %s93, %s94
      %p98 = pneg %p92
      %p99 = scmp.eq.s32.totalorder %s15, 1
      %p100 = por %p98, %p99
      %p101 = scmp.ne.s32.totalorder %s93, %s96
      %p102 = scmp.eq.s32.totalorder %s15, 0
      %p103 = por %p101, %p102
      %p104 = scmp.ne.s32.totalorder %s93, %s96
      %p105 = scmp.eq.s32.totalorder %s20, 1
      %p106 = por %p104, %p105
      %p107 = scmp.ne.s32.totalorder %s96, %s97
      %p108 = scmp.eq.s32.totalorder %s20, 0
      %p109 = por %p107, %p108
      %p110 = scmp.ne.s32.totalorder %s96, %s97
      %p111 = scmp.eq.s32.totalorder %s21, 1
      %p112 = por %p110, %p111
      %p114 = scmp.ne.s32.totalorder %s97, %s113
      %p115 = scmp.eq.s32.totalorder %s21, 0
      %p116 = por %p114, %p115
      %p117 = scmp.le.s32.totalorder 1, %s15
      %p118 = scmp.lt.s32.totalorder %s15, 3
      %p119 = pnand %p117, %p118
      %p120 = pneg %p119
      // Predicated region
      $region9: #{tpu_custom_call.1} parent=5 // pred_check
        _
      $region10: #{tpu_custom_call.1} parent=5 // pred_check_branch
        %122 = sbr.rel (%p119) target = $region12
      $region11: #{tpu_custom_call.1} parent=5 // pred_region
        %s123 = ssub.s32 %s15, 1
        // Predicated region
        $region13: #{tpu_custom_call.1} parent=11 // pred_check
          %p124 = pneg %p62
        $region14: #{tpu_custom_call.1} parent=11 // pred_check_branch
          %126 = sbr.rel (%p124) target = $region16
        $region15: #{tpu_custom_call.1} parent=11 // pred_region
          _
        $region16: #{tpu_custom_call.1} parent=11 // pred_fallthru
          _
        // Predicated region
        $region17: #{tpu_custom_call.1} parent=11 // pred_check
          %p127 = pneg %p83
        $region18: #{tpu_custom_call.1} parent=11 // pred_check_branch
          %129 = sbr.rel (%p127) target = $region20
        $region19: #{tpu_custom_call.1} parent=11 // pred_region
          _
        $region20: #{tpu_custom_call.1} parent=11 // pred_fallthru
          _
      $region12: #{tpu_custom_call.1} parent=5 // pred_fallthru
        _
      %p130 = scmp.lt.s32.totalorder %s15, 2
      // Predicated region
      $region21: #{tpu_custom_call.1} parent=5 // pred_check
        %p131 = pneg %p130
      $region22: #{tpu_custom_call.1} parent=5 // pred_check_branch
        %133 = sbr.rel (%p131) target = $region24
      $region23: #{tpu_custom_call.1} parent=5 // pred_region
        // Predicated region
        $region25: #{tpu_custom_call.1} parent=23 // pred_check
          %p134 = pneg %p35
        $region26: #{tpu_custom_call.1} parent=23 // pred_check_branch
          %136 = sbr.rel (%p134) target = $region28
        $region27: #{tpu_custom_call.1} parent=23 // pred_region
          %s137 = sand.u32 %s25, 1
          %s138 = scalar_lea.sflag [#allocation3], %s137
          %s139 = sand.u32 %s25, 1
          %s140 = smul.addr %s139, 128
          %s141 = scalar_lea.vmem [#allocation2], %s140
          %s143 = ssub.s32 2048, 2048
          %144 = vsyncadd %s138, %s143
          %s145 = smul.addr %s15, 16
          %s146 = smul.addr %s145, 128
          %s147 = scalar_lea.hbm %s0, %s146
          %s148 = sshll.u32 %s141, 4
          %s149 = int_to_ptr.vmem [resolvable:$true] %s148
          %154 = dma.hbm_to_vmem [thread:$0]  %s147, 2048, %s149, %s138, 256, 256, 16
        $region28: #{tpu_custom_call.1} parent=23 // pred_fallthru
          _
      $region24: #{tpu_custom_call.1} parent=5 // pred_fallthru
        _
      %p155 = scmp.le.s32.totalorder 1, %s15
      %p156 = scmp.lt.s32.totalorder %s15, 3
      %p157 = pnand %p155, %p156
      %p158 = pneg %p157
      // Predicated region
      $region29: #{tpu_custom_call.1} parent=5 // pred_check
        _
      $region30: #{tpu_custom_call.1} parent=5 // pred_check_branch
        %160 = sbr.rel (%p157) target = $region32
      $region31: #{tpu_custom_call.1} parent=5 // pred_region
        %s161 = ssub.s32 %s15, 1
        %s162 = sand.u32 %s28, 1
        %s163 = scalar_lea.sflag [#allocation3], %s162
        %s164 = sand.u32 %s28, 1
        %s165 = smul.addr %s164, 128
        %s166 = scalar_lea.vmem [#allocation2], %s165
        // Predicated region
        $region33: #{tpu_custom_call.1} parent=31 // pred_check
          %p167 = pneg %p41
        $region34: #{tpu_custom_call.1} parent=31 // pred_check_branch
          %169 = sbr.rel (%p167) target = $region36
        $region35: #{tpu_custom_call.1} parent=31 // pred_region
          %170 = dma.done %s163, 2048
        $region36: #{tpu_custom_call.1} parent=31 // pred_fallthru
          _
        %s171 = sand.u32 %s28, 1
        %s172 = scalar_lea.sflag [#allocation3], %s171
        %s173 = sand.u32 %s28, 1
        %s174 = smul.addr %s173, 128
        %s175 = scalar_lea.vmem [#allocation2], %s174
        %p176 = pneg %p41
        %p177 = pneg %p38
        %p178 = pneg %p62
        %p179 = pneg %p59
        %p180 = pneg %p83
        %p181 = pneg %p80
        %p182 = pneg %p109
        %p183 = pneg %p106
        %s184 = sand.u32 %s96, 1
        %s185 = scalar_lea.sflag [#allocation4], %s184
        %s186 = sand.u32 %s96, 1
        %s187 = smul.addr %s186, 128
        %s188 = scalar_lea.vmem [#allocation5], %s187
        %v189 = vld [vmem:[%s166] sm:$0xff]
        %v190 = vld [vmem:[%s166 + $0x8] sm:$0xff]
        %v191 = vld [vmem:[%s166 + $0x10] sm:$0xff]
        %v192 = vld [vmem:[%s166 + $0x18] sm:$0xff]
        %v193 = vld [vmem:[%s166 + $0x20] sm:$0xff]
        %v194 = vld [vmem:[%s166 + $0x28] sm:$0xff]
        %v195 = vld [vmem:[%s166 + $0x30] sm:$0xff]
        %v196 = vld [vmem:[%s166 + $0x38] sm:$0xff]
        %v197 = vld [vmem:[%s166 + $0x40] sm:$0xff]
        %v198 = vld [vmem:[%s166 + $0x48] sm:$0xff]
        %v199 = vld [vmem:[%s166 + $0x50] sm:$0xff]
        %v200 = vld [vmem:[%s166 + $0x58] sm:$0xff]
        %v201 = vld [vmem:[%s166 + $0x60] sm:$0xff]
        %v202 = vld [vmem:[%s166 + $0x68] sm:$0xff]
        %v203 = vld [vmem:[%s166 + $0x70] sm:$0xff]
        %v204 = vld [vmem:[%s166 + $0x78] sm:$0xff]
        %v205 = vadd.f32 %v189, %v190
        %206 = vadd.xlane.f32.xlu0 %v205
        %v207 = vpop.xlane.xlu0 %206
        %v208 = vadd.f32 %v191, %v192
        %209 = vadd.xlane.f32.xlu0 %v208
        %v210 = vpop.xlane.xlu0 %209
        %v211 = vadd.f32 %v193, %v194
        %212 = vadd.xlane.f32.xlu0 %v211
        %v213 = vpop.xlane.xlu0 %212
        %v214 = vadd.f32 %v195, %v196
        %215 = vadd.xlane.f32.xlu0 %v214
        %v216 = vpop.xlane.xlu0 %215
        %v217 = vadd.f32 %v197, %v198
        %218 = vadd.xlane.f32.xlu0 %v217
        %v219 = vpop.xlane.xlu0 %218
        %v220 = vadd.f32 %v199, %v200
        %221 = vadd.xlane.f32.xlu0 %v220
        %v222 = vpop.xlane.xlu0 %221
        %v223 = vadd.f32 %v201, %v202
        %224 = vadd.xlane.f32.xlu0 %v223
        %v225 = vpop.xlane.xlu0 %224
        %v226 = vadd.f32 %v203, %v204
        %227 = vadd.xlane.f32.xlu0 %v226
        %v228 = vpop.xlane.xlu0 %227
        %v229 = vmul.f32 %v207, 0.00390625
        %v230 = vmul.f32 %v210, 0.00390625
        %v231 = vmul.f32 %v213, 0.00390625
        %v232 = vmul.f32 %v216, 0.00390625
        %v233 = vmul.f32 %v219, 0.00390625
        %v234 = vmul.f32 %v222, 0.00390625
        %v235 = vmul.f32 %v225, 0.00390625
        %v236 = vmul.f32 %v228, 0.00390625
        %v237 = vmax.f32 %v189, %v190
        %238 = vmax.xlane.f32.xlu0 %v237
        %v239 = vpop.xlane.xlu0 %238
        %v240 = vmax.f32 %v191, %v192
        %241 = vmax.xlane.f32.xlu0 %v240
        %v242 = vpop.xlane.xlu0 %241
        %v243 = vmax.f32 %v193, %v194
        %244 = vmax.xlane.f32.xlu0 %v243
        %v245 = vpop.xlane.xlu0 %244
        %v246 = vmax.f32 %v195, %v196
        %247 = vmax.xlane.f32.xlu0 %v246
        %v248 = vpop.xlane.xlu0 %247
        %v249 = vmax.f32 %v197, %v198
        %250 = vmax.xlane.f32.xlu0 %v249
        %v251 = vpop.xlane.xlu0 %250
        %v252 = vmax.f32 %v199, %v200
        %253 = vmax.xlane.f32.xlu0 %v252
        %v254 = vpop.xlane.xlu0 %253
        %v255 = vmax.f32 %v201, %v202
        %256 = vmax.xlane.f32.xlu0 %v255
        %v257 = vpop.xlane.xlu0 %256
        %v258 = vmax.f32 %v203, %v204
        %259 = vmax.xlane.f32.xlu0 %v258
        %v260 = vpop.xlane.xlu0 %259
        %v261 = vld [vmem:[%s1] sm:$0xf]
        %v262 = vld [vmem:[%s2] sm:$0xff]
        %v263 = vld [vmem:[%s2 + $0x8] sm:$0xff]
        %v264 = vld [vmem:[%s2 + $0x10] sm:$0xff]
        %v265 = vld [vmem:[%s2 + $0x18] sm:$0xff]
        %v266 = vld [vmem:[%s2 + $0x20] sm:$0xff]
        %v267 = vld [vmem:[%s2 + $0x28] sm:$0xff]
        %v268 = vld [vmem:[%s2 + $0x30] sm:$0xff]
        %v269 = vld [vmem:[%s2 + $0x38] sm:$0xff]
        %v270 = vlaneseq
        %v271 = vand.u32 %v270, 127
        %vm272 = vcmp.eq.s32.totalorder %v271, 0
        %v273 = vsel %vm272, %v229, %v239
        %v274 = vsel %vm272, %v230, %v242
        %v275 = vsel %vm272, %v231, %v245
        %v276 = vsel %vm272, %v232, %v248
        %v277 = vsel %vm272, %v233, %v251
        %v278 = vsel %vm272, %v234, %v254
        %v279 = vsel %vm272, %v235, %v257
        %v280 = vsel %vm272, %v236, %v260
        %vm281 = vcmask 523264
        %v283 = vsel %vm281, %v261, 0
        %285 = vmatprep.subr.mxu0 0.0
        %286 = vmatpush1.msra.mxu0 %v273
        %287 = vmatprep.subr.mxu0 0.0
        %288 = vmatpush1.msra.mxu0 %v274
        %289 = vmatprep.subr.mxu0 0.0
        %290 = vmatpush1.msra.mxu0 %v275
        %291 = vmatprep.subr.mxu0 0.0
        %292 = vmatpush1.msra.mxu0 %v276
        %293 = vmatprep.subr.mxu0 0.0
        %294 = vmatpush1.msra.mxu0 %v277
        %295 = vmatprep.subr.mxu0 0.0
        %296 = vmatpush1.msra.mxu0 %v278
        %297 = vmatprep.subr.mxu0 0.0
        %298 = vmatpush1.msra.mxu0 %v279
        %299 = vmatprep.subr.mxu0 0.0
        %300 = vmatpush1.msra.mxu0 %v280
        %301 = vmatprep.subr.mxu0 0.0
        %302 = vmatpush1.msra.mxu0 0.0
        %303 = vmatprep.subr.mxu0 0.0
        %304 = vmatpush1.msra.mxu0 0.0
        %305 = vmatprep.subr.mxu0 0.0
        %306 = vmatpush1.msra.mxu0 0.0
        %307 = vmatprep.subr.mxu0 0.0
        %308 = vmatpush1.msra.mxu0 0.0
        %309 = vmatprep.subr.mxu0 0.0
        %310 = vmatpush1.msra.mxu0 0.0
        %311 = vmatprep.subr.mxu0 0.0
        %312 = vmatpush1.msra.mxu0 0.0
        %313 = vmatprep.subr.mxu0 0.0
        %314 = vmatpush1.msra.mxu0 0.0
        %315 = vmatprep.subr.mxu0 0.0
        %316 = vmatpush1.msra.mxu0 0.0
        %317 = vmatprep.subr.mxu0 0.0
        %318 = vmatpush1.msra.mxu0 0.0
        %319 = vmatprep.subr.mxu0 0.0
        %320 = vmatpush1.msra.mxu0 0.0
        %321 = vmatprep.subr.mxu0 0.0
        %322 = vmatpush1.msra.mxu0 0.0
        %323 = vmatprep.subr.mxu0 0.0
        %324 = vmatpush1.msra.mxu0 0.0
        %325 = vmatprep.subr.mxu0 0.0
        %326 = vmatpush1.msra.mxu0 0.0
        %327 = vmatprep.subr.mxu0 0.0
        %328 = vmatpush1.msra.mxu0 0.0
        %329 = vmatprep.subr.mxu0 0.0
        %330 = vmatpush1.msra.mxu0 0.0
        %331 = vmatprep.subr.mxu0 0.0
        %332 = vmatpush1.msra.mxu0 0.0
        %333 = vmatprep.subr.mxu0 0.0
        %334 = vmatpush1.msra.mxu0 0.0
        %335 = vmatprep.subr.mxu0 0.0
        %336 = vmatpush1.msra.mxu0 0.0
        %337 = vmatprep.subr.mxu0 0.0
        %338 = vmatpush1.msra.mxu0 0.0
        %339 = vmatprep.subr.mxu0 0.0
        %340 = vmatpush1.msra.mxu0 0.0
        %341 = vmatprep.subr.mxu0 0.0
        %342 = vmatpush1.msra.mxu0 0.0
        %343 = vmatprep.subr.mxu0 0.0
        %344 = vmatpush1.msra.mxu0 0.0
        %345 = vmatprep.subr.mxu0 0.0
        %346 = vmatpush1.msra.mxu0 0.0
        %347 = vmatprep.subr.mxu0 0.0
        %348 = vmatpush1.msra.mxu0 0.0
        %349 = vmatprep.mubr.f32.mxu0 0.0
        %350 = vmatmul.mubr.f32.gmra.mrb[0].mxu0 %v283
        %v351 = vpop.f32.mrb[0].mxu0
        %v352 = vadd.f32 0.0, %v351
        %v353 = vpop.f32.mrb[0].mxu0
        %354 = vdwg.mxu0
        %v355 = vmax.f32 %v352, 0.0
        %vm356 = vcmask 11264
        %v357 = vsel %vm356, %v355, 0.0
        %358 = vadd.xlane.f32.xlu0 %v357
        %v359 = vpop.xlane.xlu0 %358
        %vm360 = vcmask 31744
        %v362 = vsel %vm360, %v262, 0
        %v365 = vsel %vm360, %v263, 0
        %v368 = vsel %vm360, %v264, 0
        %v371 = vsel %vm360, %v265, 0
        %v374 = vsel %vm360, %v266, 0
        %v377 = vsel %vm360, %v267, 0
        %v380 = vsel %vm360, %v268, 0
        %v383 = vsel %vm360, %v269, 0
        %vm385 = vcmask 1043456
        %v387 = vsel %vm385, %v359, 0
        %389 = vmatprep.subr.mxu0 0.0
        %390 = vmatpush1.msra.mxu0 %v387
        %391 = vmatprep.subr.mxu0 0.0
        %392 = vmatpush1.msra.mxu0 0.0
        %393 = vmatprep.subr.mxu0 0.0
        %394 = vmatpush1.msra.mxu0 0.0
        %395 = vmatprep.subr.mxu0 0.0
        %396 = vmatpush1.msra.mxu0 0.0
        %397 = vmatprep.subr.mxu0 0.0
        %398 = vmatpush1.msra.mxu0 0.0
        %399 = vmatprep.subr.mxu0 0.0
        %400 = vmatpush1.msra.mxu0 0.0
        %401 = vmatprep.subr.mxu0 0.0
        %402 = vmatpush1.msra.mxu0 0.0
        %403 = vmatprep.subr.mxu0 0.0
        %404 = vmatpush1.msra.mxu0 0.0
        %405 = vmatprep.subr.mxu0 0.0
        %406 = vmatpush1.msra.mxu0 0.0
        %407 = vmatprep.subr.mxu0 0.0
        %408 = vmatpush1.msra.mxu0 0.0
        %409 = vmatprep.subr.mxu0 0.0
        %410 = vmatpush1.msra.mxu0 0.0
        %411 = vmatprep.subr.mxu0 0.0
        %412 = vmatpush1.msra.mxu0 0.0
        %413 = vmatprep.subr.mxu0 0.0
        %414 = vmatpush1.msra.mxu0 0.0
        %415 = vmatprep.subr.mxu0 0.0
        %416 = vmatpush1.msra.mxu0 0.0
        %417 = vmatprep.subr.mxu0 0.0
        %418 = vmatpush1.msra.mxu0 0.0
        %419 = vmatprep.subr.mxu0 0.0
        %420 = vmatpush1.msra.mxu0 0.0
        %421 = vmatprep.subr.mxu0 0.0
        %422 = vmatpush1.msra.mxu0 0.0
        %423 = vmatprep.subr.mxu0 0.0
        %424 = vmatpush1.msra.mxu0 0.0
        %425 = vmatprep.subr.mxu0 0.0
        %426 = vmatpush1.msra.mxu0 0.0
        %427 = vmatprep.subr.mxu0 0.0
        %428 = vmatpush1.msra.mxu0 0.0
        %429 = vmatprep.subr.mxu0 0.0
        %430 = vmatpush1.msra.mxu0 0.0
        %431 = vmatprep.subr.mxu0 0.0
        %432 = vmatpush1.msra.mxu0 0.0
        %433 = vmatprep.subr.mxu0 0.0
        %434 = vmatpush1.msra.mxu0 0.0
        %435 = vmatprep.subr.mxu0 0.0
        %436 = vmatpush1.msra.mxu0 0.0
        %437 = vmatprep.subr.mxu0 0.0
        %438 = vmatpush1.msra.mxu0 0.0
        %439 = vmatprep.subr.mxu0 0.0
        %440 = vmatpush1.msra.mxu0 0.0
        %441 = vmatprep.subr.mxu0 0.0
        %442 = vmatpush1.msra.mxu0 0.0
        %443 = vmatprep.subr.mxu0 0.0
        %444 = vmatpush1.msra.mxu0 0.0
        %445 = vmatprep.subr.mxu0 0.0
        %446 = vmatpush1.msra.mxu0 0.0
        %447 = vmatprep.subr.mxu0 0.0
        %448 = vmatpush1.msra.mxu0 0.0
        %449 = vmatprep.subr.mxu0 0.0
        %450 = vmatpush1.msra.mxu0 0.0
        %451 = vmatprep.subr.mxu0 0.0
        %452 = vmatpush1.msra.mxu0 0.0
        %453 = vmatprep.mubr.f32.mxu0 0.0
        %454 = vmatmul.mubr.f32.gmra.mrb[0].mxu0 %v362
        %v455 = vpop.f32.mrb[0].mxu0
        %v456 = vadd.f32 0.0, %v455
        %v457 = vpop.f32.mrb[0].mxu0
        %458 = vmatprep.mubr.f32.mxu0 0.0
        %459 = vmatmul.mubr.f32.gmra.mrb[0].mxu0 %v365
        %v460 = vpop.f32.mrb[0].mxu0
        %v461 = vadd.f32 0.0, %v460
        %v462 = vpop.f32.mrb[0].mxu0
        %463 = vmatprep.mubr.f32.mxu0 0.0
        %464 = vmatmul.mubr.f32.gmra.mrb[0].mxu0 %v368
        %v465 = vpop.f32.mrb[0].mxu0
        %v466 = vadd.f32 0.0, %v465
        %v467 = vpop.f32.mrb[0].mxu0
        %468 = vmatprep.mubr.f32.mxu0 0.0
        %469 = vmatmul.mubr.f32.gmra.mrb[0].mxu0 %v371
        %v470 = vpop.f32.mrb[0].mxu0
        %v471 = vadd.f32 0.0, %v470
        %v472 = vpop.f32.mrb[0].mxu0
        %473 = vmatprep.mubr.f32.mxu0 0.0
        %474 = vmatmul.mubr.f32.gmra.mrb[0].mxu0 %v374
        %v475 = vpop.f32.mrb[0].mxu0
        %v476 = vadd.f32 0.0, %v475
        %v477 = vpop.f32.mrb[0].mxu0
        %478 = vmatprep.mubr.f32.mxu0 0.0
        %479 = vmatmul.mubr.f32.gmra.mrb[0].mxu0 %v377
        %v480 = vpop.f32.mrb[0].mxu0
        %v481 = vadd.f32 0.0, %v480
        %v482 = vpop.f32.mrb[0].mxu0
        %483 = vmatprep.mubr.f32.mxu0 0.0
        %484 = vmatmul.mubr.f32.gmra.mrb[0].mxu0 %v380
        %v485 = vpop.f32.mrb[0].mxu0
        %v486 = vadd.f32 0.0, %v485
        %v487 = vpop.f32.mrb[0].mxu0
        %488 = vmatprep.mubr.f32.mxu0 0.0
        %489 = vmatmul.mubr.f32.gmra.mrb[0].mxu0 %v383
        %v490 = vpop.f32.mrb[0].mxu0
        %v491 = vadd.f32 0.0, %v490
        %v492 = vpop.f32.mrb[0].mxu0
        %493 = vdwg.mxu0
        %v494 = vsub.f32 0.0, %v456
        %v495 = vsub.f32 0.0, %v461
        %v496 = vsub.f32 0.0, %v466
        %v497 = vsub.f32 0.0, %v471
        %v498 = vsub.f32 0.0, %v476
        %v499 = vsub.f32 0.0, %v481
        %v500 = vsub.f32 0.0, %v486
        %v501 = vsub.f32 0.0, %v491
        %v502 = vmul.f32 %v494, 1.442695
        %v503 = vpow.pop %v502
        %v504 = vmul.f32 %v495, 1.442695
        %v505 = vpow.pop %v504
        %v506 = vmul.f32 %v496, 1.442695
        %v507 = vpow.pop %v506
        %v508 = vmul.f32 %v497, 1.442695
        %v509 = vpow.pop %v508
        %v510 = vmul.f32 %v498, 1.442695
        %v511 = vpow.pop %v510
        %v512 = vmul.f32 %v499, 1.442695
        %v513 = vpow.pop %v512
        %v514 = vmul.f32 %v500, 1.442695
        %v515 = vpow.pop %v514
        %v516 = vmul.f32 %v501, 1.442695
        %v517 = vpow.pop %v516
        %v518 = vadd.f32 %v503, 1.0
        %v519 = vadd.f32 %v505, 1.0
        %v520 = vadd.f32 %v507, 1.0
        %v521 = vadd.f32 %v509, 1.0
        %v522 = vadd.f32 %v511, 1.0
        %v523 = vadd.f32 %v513, 1.0
        %v524 = vadd.f32 %v515, 1.0
        %v525 = vadd.f32 %v517, 1.0
        %v526 = vrcp.pop %v518
        %v527 = vmul.f32 1.0, %v526
        %v528 = vrcp.pop %v519
        %v529 = vmul.f32 1.0, %v528
        %v530 = vrcp.pop %v520
        %v531 = vmul.f32 1.0, %v530
        %v532 = vrcp.pop %v521
        %v533 = vmul.f32 1.0, %v532
        %v534 = vrcp.pop %v522
        %v535 = vmul.f32 1.0, %v534
        %v536 = vrcp.pop %v523
        %v537 = vmul.f32 1.0, %v536
        %v538 = vrcp.pop %v524
        %v539 = vmul.f32 1.0, %v538
        %v540 = vrcp.pop %v525
        %v541 = vmul.f32 1.0, %v540
        %543 = vset.pattern.permute.xlu0 0
        %544 = vperm.xlu0 %543, %v527
        %v545 = vpop.permute.xlu0 %544
        %548 = vset.pattern.permute.xlu0 0
        %549 = vperm.xlu0 %548, %v529
        %v550 = vpop.permute.xlu0 %549
        %553 = vset.pattern.permute.xlu0 0
        %554 = vperm.xlu0 %553, %v531
        %v555 = vpop.permute.xlu0 %554
        %558 = vset.pattern.permute.xlu0 0
        %559 = vperm.xlu0 %558, %v533
        %v560 = vpop.permute.xlu0 %559
        %563 = vset.pattern.permute.xlu0 0
        %564 = vperm.xlu0 %563, %v535
        %v565 = vpop.permute.xlu0 %564
        %568 = vset.pattern.permute.xlu0 0
        %569 = vperm.xlu0 %568, %v537
        %v570 = vpop.permute.xlu0 %569
        %573 = vset.pattern.permute.xlu0 0
        %574 = vperm.xlu0 %573, %v539
        %v575 = vpop.permute.xlu0 %574
        %578 = vset.pattern.permute.xlu0 0
        %579 = vperm.xlu0 %578, %v541
        %v580 = vpop.permute.xlu0 %579
        %v582 = vmul.f32 %v189, %v545
        %v583 = vmul.f32 %v190, %v545
        %v584 = vmul.f32 %v191, %v550
        %v585 = vmul.f32 %v192, %v550
        %v586 = vmul.f32 %v193, %v555
        %v587 = vmul.f32 %v194, %v555
        %v588 = vmul.f32 %v195, %v560
        %v589 = vmul.f32 %v196, %v560
        %v590 = vmul.f32 %v197, %v565
        %v591 = vmul.f32 %v198, %v565
        %v592 = vmul.f32 %v199, %v570
        %v593 = vmul.f32 %v200, %v570
        %v594 = vmul.f32 %v201, %v575
        %v595 = vmul.f32 %v202, %v575
        %v596 = vmul.f32 %v203, %v580
        %v597 = vmul.f32 %v204, %v580
        %598 = vst [vmem:[%s188] sm:$0xff] %v582
        %599 = vst [vmem:[%s188 + $0x8] sm:$0xff] %v583
        %600 = vst [vmem:[%s188 + $0x10] sm:$0xff] %v584
        %601 = vst [vmem:[%s188 + $0x18] sm:$0xff] %v585
        %602 = vst [vmem:[%s188 + $0x20] sm:$0xff] %v586
        %603 = vst [vmem:[%s188 + $0x28] sm:$0xff] %v587
        %604 = vst [vmem:[%s188 + $0x30] sm:$0xff] %v588
        %605 = vst [vmem:[%s188 + $0x38] sm:$0xff] %v589
        %606 = vst [vmem:[%s188 + $0x40] sm:$0xff] %v590
        %607 = vst [vmem:[%s188 + $0x48] sm:$0xff] %v591
        %608 = vst [vmem:[%s188 + $0x50] sm:$0xff] %v592
        %609 = vst [vmem:[%s188 + $0x58] sm:$0xff] %v593
        %610 = vst [vmem:[%s188 + $0x60] sm:$0xff] %v594
        %611 = vst [vmem:[%s188 + $0x68] sm:$0xff] %v595
        %612 = vst [vmem:[%s188 + $0x70] sm:$0xff] %v596
        %613 = vst [vmem:[%s188 + $0x78] sm:$0xff] %v597
        %s614 = sand.u32 %s96, 1
        %s615 = scalar_lea.sflag [#allocation4], %s614
        %s616 = sand.u32 %s96, 1
        %s617 = smul.addr %s616, 128
        %s618 = scalar_lea.vmem [#allocation5], %s617
        // Predicated region
        $region37: #{tpu_custom_call.1} parent=31 // pred_check
          %p619 = pneg %p106
        $region38: #{tpu_custom_call.1} parent=31 // pred_check_branch
          %621 = sbr.rel (%p619) target = $region40
        $region39: #{tpu_custom_call.1} parent=31 // pred_region
          %s623 = ssub.s32 2048, 2048
          %624 = vsyncadd %s615, %s623
          %s625 = smul.addr %s20, 16
          %s626 = smul.addr %s625, 128
          %s627 = scalar_lea.hbm %s3, %s626
          %s628 = sshll.u32 %s618, 4
          %s629 = int_to_ptr.vmem [resolvable:$true] %s628
          %634 = dma.vmem_to_hbm [thread:$0]  %s629, 2048, %s627, %s615, 256, 256, 16
        $region40: #{tpu_custom_call.1} parent=31 // pred_fallthru
          _
      $region32: #{tpu_custom_call.1} parent=5 // pred_fallthru
        _
      %p635 = scmp.le.s32.totalorder 2, %s15
      // Predicated region
      $region41: #{tpu_custom_call.1} parent=5 // pred_check
        %p636 = pneg %p635
      $region42: #{tpu_custom_call.1} parent=5 // pred_check_branch
        %638 = sbr.rel (%p636) target = $region44
      $region43: #{tpu_custom_call.1} parent=5 // pred_region
        %s639 = ssub.s32 %s15, 2
        // Predicated region
        $region45: #{tpu_custom_call.1} parent=43 // pred_check
          %p640 = pneg %p112
        $region46: #{tpu_custom_call.1} parent=43 // pred_check_branch
          %642 = sbr.rel (%p640) target = $region48
        $region47: #{tpu_custom_call.1} parent=43 // pred_region
          %s643 = sand.u32 %s97, 1
          %s644 = scalar_lea.sflag [#allocation4], %s643
          %s645 = sand.u32 %s97, 1
          %s646 = smul.addr %s645, 128
          %s647 = scalar_lea.vmem [#allocation5], %s646
          %648 = dma.done %s644, 2048
        $region48: #{tpu_custom_call.1} parent=43 // pred_fallthru
          _
      $region44: #{tpu_custom_call.1} parent=5 // pred_fallthru
        _
    $region6: #{tpu_custom_call.1} parent=1 // loop_footer
      %s19 = sadd.s32 1, %s15
    $region7: #{tpu_custom_call.1} parent=1 // loop_footer_branch
      %14 = sbr.rel target = $region3
    $region8: #{tpu_custom_call.1} parent=1 // loop_exit
      _
    %649 = vsyncpa [#allocation3], 1
    %s650 = scalar_lea.sflag [#allocation3], 1
    %651 = vsyncpa %s650, 1
    %652 = vsyncpa [#allocation4], 1
    %s653 = scalar_lea.sflag [#allocation4], 1
    %654 = vsyncpa %s653, 1

</llo_original>
